<compile_context>
chip_gen: v6e
topology: v6e:2x2x1
jax: 0.10.0
libtpu: 0.0.40
codegen_flags: <defaults>
</compile_context>

<pallas_src>
import functools
import math

import jax
import jax.numpy as jnp
from jax.experimental import pallas as pl
from jax.experimental.pallas import tpu as pltpu


# ----------------------------------------------------------------------------
# helpers
# ----------------------------------------------------------------------------
def _pick_tile(dim: int, max_tile: int, align: int) -> int:
    """Largest tile <= max_tile that divides `dim` and is `align`-aligned."""
    if dim <= max_tile:
        return dim
    t = (max_tile // align) * align
    while t >= align:
        if dim % t == 0:
            return t
        t -= align
    return dim


# ----------------------------------------------------------------------------
# LayerNorm kernel
# ----------------------------------------------------------------------------
def _layernorm_kernel(x_ref, g_ref, b_ref, o_ref):
    x = x_ref[...].astype(jnp.float32)
    mean = jnp.mean(x, axis=-1, keepdims=True)
    xc = x - mean
    var = jnp.mean(xc * xc, axis=-1, keepdims=True)
    inv = jax.lax.rsqrt(var + 1e-5)  # nn.LayerNorm default eps
    y = xc * inv * g_ref[...].astype(jnp.float32) + b_ref[...].astype(jnp.float32)
    o_ref[...] = y.astype(o_ref.dtype)


def layernorm(x, gamma, beta):
    """x: (R, E); gamma/beta: (E,)."""
    R, E = x.shape
    tr = _pick_tile(R, 512, 8)
    return pl.pallas_call(
        _layernorm_kernel,
        out_shape=jax.ShapeDtypeStruct((R, E), x.dtype),
        grid=(R // tr,),
        in_specs=[
            pl.BlockSpec((tr, E), lambda i: (i, 0)),
            pl.BlockSpec((1, E), lambda i: (0, 0)),
            pl.BlockSpec((1, E), lambda i: (0, 0)),
        ],
        out_specs=pl.BlockSpec((tr, E), lambda i: (i, 0)),
        compiler_params=pltpu.CompilerParams(dimension_semantics=("parallel",)),
    )(x, gamma.reshape(1, E), beta.reshape(1, E))


# ----------------------------------------------------------------------------
# Attention core (per batch, per head): softmax(Q K^T / sqrt(E)) V
# ----------------------------------------------------------------------------
def _attn_kernel(q_ref, k_ref, v_ref, o_ref, *, scale):
    q = q_ref[...].astype(jnp.float32)
    k = k_ref[...].astype(jnp.float32)
    v = v_ref[...].astype(jnp.float32)
    s = jnp.dot(q, k.T, preferred_element_type=jnp.float32) * scale
    s = s - jnp.max(s, axis=-1, keepdims=True)
    p = jnp.exp(s)
    p = p / jnp.sum(p, axis=-1, keepdims=True)
    o_ref[...] = jnp.dot(p, v, preferred_element_type=jnp.float32).astype(o_ref.dtype)


def attention_core(q, k, v, scale):
    """q: (N, H, Lq, D); k, v: (N, H, Lk, D) -> (N, H, Lq, D)."""
    N, H, Lq, D = q.shape
    Lk = k.shape[2]
    kernel = functools.partial(_attn_kernel, scale=scale)
    return pl.pallas_call(
        kernel,
        out_shape=jax.ShapeDtypeStruct((N, H, Lq, D), q.dtype),
        grid=(N, H),
        in_specs=[
            pl.BlockSpec((None, None, Lq, D), lambda b, h: (b, h, 0, 0)),
            pl.BlockSpec((None, None, Lk, D), lambda b, h: (b, h, 0, 0)),
            pl.BlockSpec((None, None, Lk, D), lambda b, h: (b, h, 0, 0)),
        ],
        out_specs=pl.BlockSpec((None, None, Lq, D), lambda b, h: (b, h, 0, 0)),
        compiler_params=pltpu.CompilerParams(
            dimension_semantics=("parallel", "parallel")),
    )(q, k, v)


# ----------------------------------------------------------------------------
# Linear kernel: out = [relu](x @ W + b) [+ residual], fused epilogue
# ----------------------------------------------------------------------------
def _make_linear_kernel(relu: bool, has_residual: bool):
    def kernel(*refs):
        if has_residual:
            x_ref, w_ref, b_ref, r_ref, o_ref, acc_ref = refs
        else:
            x_ref, w_ref, b_ref, o_ref, acc_ref = refs

        k = pl.program_id(2)

        @pl.when(k == 0)
        def _():
            acc_ref[...] = jnp.zeros_like(acc_ref)

        acc_ref[...] += jnp.dot(x_ref[...], w_ref[...],
                                preferred_element_type=jnp.float32)

        @pl.when(k == pl.num_programs(2) - 1)
        def _():
            y = acc_ref[...] + b_ref[...].astype(jnp.float32)
            if relu:
                y = jnp.maximum(y, 0.0)
            if has_residual:
                y = y + r_ref[...].astype(jnp.float32)
            o_ref[...] = y.astype(o_ref.dtype)

    return kernel


def linear(x, w, b, *, relu=False, residual=None):
    """x: (M, K); w: (K, N) (already transposed from PyTorch layout); b: (N,)."""
    M, K = x.shape
    K2, Nout = w.shape
    assert K == K2
    tm = _pick_tile(M, 256, 8)
    tn = _pick_tile(Nout, 256, 128)
    tk = _pick_tile(K, 128, 128)
    grid = (M // tm, Nout // tn, K // tk)

    in_specs = [
        pl.BlockSpec((tm, tk), lambda i, j, k: (i, k)),
        pl.BlockSpec((tk, tn), lambda i, j, k: (k, j)),
        pl.BlockSpec((1, tn), lambda i, j, k: (0, j)),
    ]
    args = [x, w, b.reshape(1, Nout)]
    if residual is not None:
        in_specs.append(pl.BlockSpec((tm, tn), lambda i, j, k: (i, j)))
        args.append(residual)

    return pl.pallas_call(
        _make_linear_kernel(relu, residual is not None),
        out_shape=jax.ShapeDtypeStruct((M, Nout), x.dtype),
        grid=grid,
        in_specs=in_specs,
        out_specs=pl.BlockSpec((tm, tn), lambda i, j, k: (i, j)),
        scratch_shapes=[pltpu.VMEM((tm, tn), jnp.float32)],
        compiler_params=pltpu.CompilerParams(
            dimension_semantics=("parallel", "parallel", "arbitrary")),
    )(*args)


# ----------------------------------------------------------------------------
# TransformerBlock forward (Pallas path)
# ----------------------------------------------------------------------------
def transformer_block_forward(params, value, key, query, mask=None):
    """value/key/query: (N, L, E). Mirrors TransformerBlock.forward."""
    if mask is not None:
        # TODO(synk): mask != None (masked_fill) path of the attention is not implemented.
        raise NotImplementedError("mask is not supported in the Pallas path")

    H = params["heads"]
    N, Lq, E = query.shape
    D = E // H

    def _ln1(t):
        n, l, _ = t.shape
        return layernorm(t.reshape(n * l, E),
                         params["ln1_g"], params["ln1_b"]).reshape(n, l, E)

    qn, kn, vn = _ln1(query), _ln1(key), _ln1(value)

    def _to_heads(t):  # (N, L, E) -> (N, H, L, D), head_dim lane-dense last
        n, l, _ = t.shape
        return t.reshape(n, l, H, D).transpose(0, 2, 1, 3)

    oh = attention_core(_to_heads(qn), _to_heads(kn), _to_heads(vn),
                        scale=1.0 / math.sqrt(E))          # (N, H, Lq, D)
    attn_flat = oh.transpose(0, 2, 1, 3).reshape(N * Lq, E)

    # fc_out with fused residual (+ query)
    x = linear(attn_flat, params["wo"], params["bo"],
               residual=query.reshape(N * Lq, E))
    # norm2
    x = layernorm(x, params["ln2_g"], params["ln2_b"])
    # FeedForward with fused ReLU and fused residual (+ x)
    h = linear(x, params["w1"], params["b1"], relu=True)
    out = linear(h, params["w2"], params["b2"], residual=x)
    return out.reshape(N, Lq, E)


# ----------------------------------------------------------------------------
# Pure-JAX reference (mirrors the PyTorch module exactly)
# ----------------------------------------------------------------------------
def _ref_layernorm(x, g, b, eps=1e-5):
    mean = jnp.mean(x, axis=-1, keepdims=True)
    var = jnp.mean((x - mean) ** 2, axis=-1, keepdims=True)
    return (x - mean) / jnp.sqrt(var + eps) * g + b


def ref_transformer_block(params, value, key, query):
    H = params["heads"]
    N, Lq, E = query.shape
    D = E // H
    qn = _ref_layernorm(query, params["ln1_g"], params["ln1_b"])
    kn = _ref_layernorm(key, params["ln1_g"], params["ln1_b"])
    vn = _ref_layernorm(value, params["ln1_g"], params["ln1_b"])
    qh = qn.reshape(N, Lq, H, D)
    kh = kn.reshape(N, key.shape[1], H, D)
    vh = vn.reshape(N, value.shape[1], H, D)
    energy = jnp.einsum("nqhd,nkhd->nhqk", qh, kh)
    attn = jax.nn.softmax(energy / math.sqrt(E), axis=3)
    o = jnp.einsum("nhql,nlhd->nqhd", attn, vh).reshape(N, Lq, E)
    o = o @ params["wo"] + params["bo"]
    x = o + query
    x = _ref_layernorm(x, params["ln2_g"], params["ln2_b"])
    f = jnp.maximum(x @ params["w1"] + params["b1"], 0.0) @ params["w2"] + params["b2"]
    return f + x


# ----------------------------------------------------------------------------
# main
# ----------------------------------------------------------------------------
if __name__ == "__main__":
    N, L, E, H, FF = 2, 16, 128, 4, 256  # embed multiple of 128 -> lane-dense
    f32 = jnp.float32

    ks = jax.random.split(jax.random.PRNGKey(0), 13)
    value = jax.random.normal(ks[0], (N, L, E), f32)
    key_in = jax.random.normal(ks[1], (N, L, E), f32)
    query = jax.random.normal(ks[2], (N, L, E), f32)

    params = dict(
        heads=H,
        ln1_g=jnp.ones((E,), f32) + 0.1 * jax.random.normal(ks[3], (E,), f32),
        ln1_b=0.1 * jax.random.normal(ks[4], (E,), f32),
        ln2_g=jnp.ones((E,), f32) + 0.1 * jax.random.normal(ks[5], (E,), f32),
        ln2_b=0.1 * jax.random.normal(ks[6], (E,), f32),
        # weights stored as (in, out) = PyTorch weight.T
        wo=jax.random.normal(ks[7], (E, E), f32) / math.sqrt(E),
        bo=0.1 * jax.random.normal(ks[8], (E,), f32),
        w1=jax.random.normal(ks[9], (E, FF), f32) / math.sqrt(E),
        b1=0.1 * jax.random.normal(ks[10], (FF,), f32),
        w2=jax.random.normal(ks[11], (FF, E), f32) / math.sqrt(FF),
        b2=0.1 * jax.random.normal(ks[12], (E,), f32),
    )

    out = transformer_block_forward(params, value, key_in, query, mask=None)
    out = jax.block_until_ready(out)

    ref = ref_transformer_block(params, value, key_in, query)
    assert out.shape == (N, L, E)
    assert jnp.allclose(out, ref, atol=2e-2, rtol=2e-2), float(
        jnp.max(jnp.abs(out - ref)))

    print("KERNEL_OK")
</pallas_src>

<mosaic_0001>
module attributes {stable_mosaic.version = 11 : i64} {
  func.func @_layernorm_kernel(%arg0: i32, %arg1: memref<32x128xf32, #tpu.memory_space<vmem>>, %arg2: memref<1x128xf32, #tpu.memory_space<vmem>>, %arg3: memref<1x128xf32, #tpu.memory_space<vmem>>, %arg4: memref<32x128xf32, #tpu.memory_space<vmem>>) attributes {dimension_semantics = [#tpu.dimension_semantics<parallel>], iteration_bounds = array<i64: 1>, scalar_prefetch = 0 : i64, scratch_operands = 0 : i64, tpu.core_type = #tpu.core_type<tc>, window_params = [{transform_indices = @transform_0, window_bounds = array<i64: 32, 128>}, {pipeline_mode = #tpu.pipeline_mode<synchronous>, transform_indices = @transform_1, window_bounds = array<i64: 1, 128>}, {pipeline_mode = #tpu.pipeline_mode<synchronous>, transform_indices = @transform_2, window_bounds = array<i64: 1, 128>}, {transform_indices = @transform_3, window_bounds = array<i64: 32, 128>}]} {
    %c0 = arith.constant 0 : index
    %c0_0 = arith.constant 0 : index
    %0 = vector.load %arg1[%c0, %c0_0] : memref<32x128xf32, #tpu.memory_space<vmem>>, vector<32x128xf32>
    %cst = arith.constant dense<0.000000e+00> : vector<32xf32>
    %1 = vector.multi_reduction <add>, %0, %cst [1] : vector<32x128xf32> to vector<32xf32>
    %2 = vector.shape_cast %1 : vector<32xf32> to vector<32x1xf32>
    %cst_1 = arith.constant 1.280000e+02 : f32
    %3 = vector.broadcast %cst_1 : f32 to vector<32x1xf32>
    %4 = arith.divf %2, %3 : vector<32x1xf32>
    %5 = vector.broadcast %4 : vector<32x1xf32> to vector<32x128xf32>
    %6 = arith.subf %0, %5 : vector<32x128xf32>
    %7 = arith.mulf %6, %6 : vector<32x128xf32>
    %cst_2 = arith.constant dense<0.000000e+00> : vector<32xf32>
    %8 = vector.multi_reduction <add>, %7, %cst_2 [1] : vector<32x128xf32> to vector<32xf32>
    %9 = vector.shape_cast %8 : vector<32xf32> to vector<32x1xf32>
    %cst_3 = arith.constant 1.280000e+02 : f32
    %10 = vector.broadcast %cst_3 : f32 to vector<32x1xf32>
    %11 = arith.divf %9, %10 : vector<32x1xf32>
    %cst_4 = arith.constant 9.99999974E-6 : f32
    %12 = vector.broadcast %cst_4 : f32 to vector<32x1xf32>
    %13 = arith.addf %11, %12 : vector<32x1xf32>
    %14 = math.rsqrt %13 : vector<32x1xf32>
    %15 = vector.broadcast %14 : vector<32x1xf32> to vector<32x128xf32>
    %16 = arith.mulf %6, %15 : vector<32x128xf32>
    %c0_5 = arith.constant 0 : index
    %c0_6 = arith.constant 0 : index
    %17 = vector.load %arg2[%c0_5, %c0_6] : memref<1x128xf32, #tpu.memory_space<vmem>>, vector<1x128xf32>
    %18 = vector.broadcast %17 : vector<1x128xf32> to vector<32x128xf32>
    %19 = arith.mulf %16, %18 : vector<32x128xf32>
    %c0_7 = arith.constant 0 : index
    %c0_8 = arith.constant 0 : index
    %20 = vector.load %arg3[%c0_7, %c0_8] : memref<1x128xf32, #tpu.memory_space<vmem>>, vector<1x128xf32>
    %21 = vector.broadcast %20 : vector<1x128xf32> to vector<32x128xf32>
    %22 = arith.addf %19, %21 : vector<32x128xf32>
    %c0_9 = arith.constant 0 : index
    %c0_10 = arith.constant 0 : index
    %23 = vector.load %arg4[%c0_9, %c0_10] : memref<32x128xf32, #tpu.memory_space<vmem>>, vector<32x128xf32>
    tpu.vector_store %arg4[%c0_9, %c0_10], %22 {strides = array<i32>} : memref<32x128xf32, #tpu.memory_space<vmem>>, vector<32x128xf32>,
    return
  }
  func.func @transform_0(%arg0: i32) -> (i32, i32) {
    %c0_i32 = arith.constant 0 : i32
    %c0_i32_0 = arith.constant 0 : i32
    return %arg0, %c0_i32 : i32, i32
  }
  func.func @transform_1(%arg0: i32) -> (i32, i32) {
    %c0_i32 = arith.constant 0 : i32
    %c0_i32_0 = arith.constant 0 : i32
    %c0_i32_1 = arith.constant 0 : i32
    return %c0_i32, %c0_i32_0 : i32, i32
  }
  func.func @transform_2(%arg0: i32) -> (i32, i32) {
    %c0_i32 = arith.constant 0 : i32
    %c0_i32_0 = arith.constant 0 : i32
    %c0_i32_1 = arith.constant 0 : i32
    return %c0_i32, %c0_i32_0 : i32, i32
  }
  func.func @transform_3(%arg0: i32) -> (i32, i32) {
    %c0_i32 = arith.constant 0 : i32
    %c0_i32_0 = arith.constant 0 : i32
    return %arg0, %c0_i32 : i32, i32
  }
}

</mosaic_0001>

<llo_original>
// kernel: tpu_custom_call.1
$region0: #{tpu_custom_call.1}
  #allocation0 [shape = 'u32[]', space=smem, size = 0x4, offset = 0x4, fixed_abs, tag = 'smem constant byte address 0x4 - core index']
  #allocation1 [shape = 'u32[144,128]{1,0:T(1,128)}', space=vmem, size = 0x12000, scoped, tag = 'internal scratch']
  %s0 = inlined_call_operand.hbm [shape: f32[32,128], index: 0, kind: input, shape index: {}]
  %s1 = inlined_call_operand.vmem [shape: f32[1,128], index: 1, kind: input, shape index: {}]
  %s2 = inlined_call_operand.vmem [shape: f32[1,128], index: 2, kind: input, shape index: {}]
  %s3 = inlined_call_operand.hbm [shape: f32[32,128], index: 3, kind: output, shape index: {}]
  %s4 = sld [smem:[#allocation0]]
  $region26: #{tpu_custom_call.1} parent=0
    _
  %s6 = ssub.s32 1, %s4
  %s7 = scalar_select 0, %s6, %s4
  $region1: #{tpu_custom_call.1} parent=0
    #allocation2 [shape = 'u8[16384]{0}', space=vmem, size = 0x4000, scoped, tag = 'input window, operand 0, single buffered']
    #allocation3 [shape = 's32[1]{0}', space=sflag, size = 0x4, scoped, tag = 'scoped memory for tpu_custom_call.1']
    #allocation4 [shape = 's32[1]{0}', space=sflag, size = 0x4, scoped, tag = 'scoped memory for tpu_custom_call.1']
    #allocation5 [shape = 'u8[16384]{0}', space=vmem, size = 0x4000, scoped, tag = 'output window, operand 0, single buffered']
    %8 = vsyncpa [#allocation3], 0
    %9 = vsyncpa [#allocation4], 0
    // Predicated region
    $region2: #{tpu_custom_call.1} parent=1 // pred_check
      _
    $region3: #{tpu_custom_call.1} parent=1 // pred_check_branch
      %11 = sbr.rel (0) target = $region5
    $region4: #{tpu_custom_call.1} parent=1 // pred_region
      %s13 = ssub.s32 512, 512
      %14 = vsyncadd [#allocation3], %s13
      %s15 = sshll.u32 [#allocation2], 4
      %s16 = int_to_ptr.vmem [resolvable:$true] %s15
      %21 = dma.hbm_to_vmem [thread:$0]  %s0, 512, %s16, [#allocation3], 128, 128, 8
    $region5: #{tpu_custom_call.1} parent=1 // pred_fallthru
      _
    // Predicated region
    $region6: #{tpu_custom_call.1} parent=1 // pred_check
      _
    $region7: #{tpu_custom_call.1} parent=1 // pred_check_branch
      %23 = sbr.rel (0) target = $region9
    $region8: #{tpu_custom_call.1} parent=1 // pred_region
      _
    $region9: #{tpu_custom_call.1} parent=1 // pred_fallthru
      _
    // Predicated region
    $region10: #{tpu_custom_call.1} parent=1 // pred_check
      _
    $region11: #{tpu_custom_call.1} parent=1 // pred_check_branch
      %25 = sbr.rel (0) target = $region13
    $region12: #{tpu_custom_call.1} parent=1 // pred_region
      _
    $region13: #{tpu_custom_call.1} parent=1 // pred_fallthru
      _
    // Predicated region
    $region14: #{tpu_custom_call.1} parent=1 // pred_check
      _
    $region15: #{tpu_custom_call.1} parent=1 // pred_check_branch
      %27 = sbr.rel (0) target = $region17
    $region16: #{tpu_custom_call.1} parent=1 // pred_region
      %28 = dma.done [#allocation3], 512
    $region17: #{tpu_custom_call.1} parent=1 // pred_fallthru
      _
    %v29 = vld [vmem:[#allocation2] sm:$0xff]
    %v30 = vld [vmem:[#allocation2 + $0x8] sm:$0xff]
    %v31 = vld [vmem:[#allocation2 + $0x10] sm:$0xff]
    %v32 = vld [vmem:[#allocation2 + $0x18] sm:$0xff]
    %33 = vadd.xlane.f32.xlu0 %v29
    %v34 = vpop.xlane.xlu0 %33
    %35 = vadd.xlane.f32.xlu0 %v30
    %v36 = vpop.xlane.xlu0 %35
    %37 = vadd.xlane.f32.xlu0 %v31
    %v38 = vpop.xlane.xlu0 %37
    %39 = vadd.xlane.f32.xlu0 %v32
    %v40 = vpop.xlane.xlu0 %39
    %v41 = vrcp.pop 128.0
    %v42 = vmul.f32 %v34, %v41
    %v43 = vmul.f32 %v36, %v41
    %v44 = vmul.f32 %v38, %v41
    %v45 = vmul.f32 %v40, %v41
    %v46 = vsub.f32 %v29, %v42
    %v47 = vsub.f32 %v30, %v43
    %v48 = vsub.f32 %v31, %v44
    %v49 = vsub.f32 %v32, %v45
    %v50 = vmul.f32 %v46, %v46
    %v51 = vmul.f32 %v47, %v47
    %v52 = vmul.f32 %v48, %v48
    %v53 = vmul.f32 %v49, %v49
    %54 = vadd.xlane.f32.xlu0 %v50
    %v55 = vpop.xlane.xlu0 %54
    %56 = vadd.xlane.f32.xlu0 %v51
    %v57 = vpop.xlane.xlu0 %56
    %58 = vadd.xlane.f32.xlu0 %v52
    %v59 = vpop.xlane.xlu0 %58
    %60 = vadd.xlane.f32.xlu0 %v53
    %v61 = vpop.xlane.xlu0 %60
    %v62 = vmul.f32 %v55, %v41
    %v63 = vmul.f32 %v57, %v41
    %v64 = vmul.f32 %v59, %v41
    %v65 = vmul.f32 %v61, %v41
    %v66 = vadd.f32 %v62, 1e-05
    %v67 = vadd.f32 %v63, 1e-05
    %v68 = vadd.f32 %v64, 1e-05
    %v69 = vadd.f32 %v65, 1e-05
    %v70 = vrsqrt.pop %v66
    %v71 = vrsqrt.pop %v67
    %v72 = vrsqrt.pop %v68
    %v73 = vrsqrt.pop %v69
    %v74 = vmul.f32 %v46, %v70
    %v75 = vmul.f32 %v47, %v71
    %v76 = vmul.f32 %v48, %v72
    %v77 = vmul.f32 %v49, %v73
    %v78 = vld [vmem:[%s1] sm:$0x1]
    %v80 = vlaneseq
    %v81 = vshrl.u32 %v80, 7
    %v82 = vsub.s32 0, %v81
    %v83 = vrot.slane %v78, %v82
    %v85 = vmul.f32 %v74, %v83
    %v86 = vmul.f32 %v75, %v83
    %v87 = vmul.f32 %v76, %v83
    %v88 = vmul.f32 %v77, %v83
    %v89 = vld [vmem:[%s2] sm:$0x1]
    %v91 = vlaneseq
    %v92 = vshrl.u32 %v91, 7
    %v93 = vsub.s32 0, %v92
    %v94 = vrot.slane %v89, %v93
    %v96 = vadd.f32 %v85, %v94
    %v97 = vadd.f32 %v86, %v94
    %v98 = vadd.f32 %v87, %v94
    %v99 = vadd.f32 %v88, %v94
    %100 = vst [vmem:[#allocation5] sm:$0xff] %v96
    %101 = vst [vmem:[#allocation5 + $0x8] sm:$0xff] %v97
    %102 = vst [vmem:[#allocation5 + $0x10] sm:$0xff] %v98
    %103 = vst [vmem:[#allocation5 + $0x18] sm:$0xff] %v99
    // Predicated region
    $region18: #{tpu_custom_call.1} parent=1 // pred_check
      _
    $region19: #{tpu_custom_call.1} parent=1 // pred_check_branch
      %105 = sbr.rel (0) target = $region21
    $region20: #{tpu_custom_call.1} parent=1 // pred_region
      %s107 = ssub.s32 512, 512
      %108 = vsyncadd [#allocation4], %s107
      %s109 = sshll.u32 [#allocation5], 4
      %s110 = int_to_ptr.vmem [resolvable:$true] %s109
      %115 = dma.vmem_to_hbm [thread:$0]  %s110, 512, %s3, [#allocation4], 128, 128, 8
    $region21: #{tpu_custom_call.1} parent=1 // pred_fallthru
      _
    // Predicated region
    $region22: #{tpu_custom_call.1} parent=1 // pred_check
      _
    $region23: #{tpu_custom_call.1} parent=1 // pred_check_branch
      %117 = sbr.rel (0) target = $region25
    $region24: #{tpu_custom_call.1} parent=1 // pred_region
      %118 = dma.done [#allocation4], 512
    $region25: #{tpu_custom_call.1} parent=1 // pred_fallthru
      _
    %119 = vsyncpa [#allocation3], 1
    %120 = vsyncpa [#allocation4], 1

</llo_original>
